<compile_context>
chip_gen: v5e
topology: v5e:2x2
jax: 0.10.0
libtpu: 0.0.40
codegen_flags: <defaults>
</compile_context>

<pallas_src>
import jax
import jax.numpy as jnp
from jax.experimental import pallas as pl
from jax.experimental.pallas import tpu as pltpu


LANE = 128  # TPU vreg lane width


def _round_up(x, m):
    return ((x + m - 1) // m) * m


def _pad_cols(x, target):
    pad = target - x.shape[1]
    return jnp.pad(x, ((0, 0), (0, pad))) if pad > 0 else x


def _pad_rows(x, target):
    pad = target - x.shape[0]
    return jnp.pad(x, ((0, pad), (0, 0))) if pad > 0 else x


def ppo_fused_kernel(obs_ref, w1_ref, b1_ref, w2_ref, b2_ref, w3_ref, b3_ref,
                     mask_ref, out_ref):
    """One grid step: a (tile_b, num_obs) tile through the fused actor+critic MLP."""
    x = obs_ref[...]

    # Layer 1 (actor & critic fused): (tile_b, num_obs) @ (num_obs, HID_PAD)
    h = jnp.dot(x, w1_ref[...], preferred_element_type=jnp.float32) + b1_ref[...]
    h = jnp.maximum(h, 0.0)

    # Layer 2 (block-diagonal, actor/critic halves stay independent)
    h = h.astype(w2_ref.dtype)
    h = jnp.dot(h, w2_ref[...], preferred_element_type=jnp.float32) + b2_ref[...]
    h = jnp.maximum(h, 0.0)

    # Layer 3 (block-diagonal) -> (tile_b, OUT_PAD) lane-dense output
    h = h.astype(w3_ref.dtype)
    z = jnp.dot(h, w3_ref[...], preferred_element_type=jnp.float32) + b3_ref[...]

    # tanh only on the actor columns (mask==1); value/padding columns pass through.
    mask = mask_ref[...]  # (1, OUT_PAD) f32, broadcast over the batch tile
    out_ref[...] = (z + mask * (jnp.tanh(z) - z)).astype(out_ref.dtype)


def fuse_params(params, *, dtype=jnp.float32):
    """Pack the 6 per-branch Linear layers into 3 fused, lane-padded weight matrices.

    Done once outside the kernel.  All padded rows/columns are zero, so the
    padded network is exactly equivalent to the original on the live columns.
    Pass dtype=jnp.bfloat16 on v6e/v7x to halve the HBM/VMEM byte count
    (relax the correctness tolerance accordingly).
    """
    H = params["a_w2"].shape[0]
    A = params["a_w3"].shape[1]
    hid = 2 * H
    hid_pad = _round_up(hid, LANE)
    out = A + 1
    out_pad = _round_up(out, LANE)

    zHH = jnp.zeros((H, H), jnp.float32)

    w1 = jnp.concatenate([params["a_w1"], params["c_w1"]], axis=1)          # (num_obs, 2H)
    b1 = jnp.concatenate([params["a_b1"], params["c_b1"]], axis=1)          # (1, 2H)
    w2 = jnp.block([[params["a_w2"], zHH],
                    [zHH, params["c_w2"]]])                                 # (2H, 2H)
    b2 = jnp.concatenate([params["a_b2"], params["c_b2"]], axis=1)          # (1, 2H)
    w3 = jnp.block([[params["a_w3"], jnp.zeros((H, 1), jnp.float32)],
                    [jnp.zeros((H, A), jnp.float32), params["c_w3"]]])      # (2H, A+1)
    b3 = jnp.concatenate([params["a_b3"], params["c_b3"]], axis=1)          # (1, A+1)

    # Zero-pad lane dims up to 128 multiples (and matching K rows for w2/w3).
    w1 = _pad_cols(w1, hid_pad)
    b1 = _pad_cols(b1, hid_pad)
    w2 = _pad_cols(_pad_rows(w2, hid_pad), hid_pad)
    b2 = _pad_cols(b2, hid_pad)
    w3 = _pad_cols(_pad_rows(w3, hid_pad), out_pad)
    b3 = _pad_cols(b3, out_pad)

    # Hoisted column mask: 1.0 on actor columns, 0.0 on value/padding columns.
    mask = (jnp.arange(out_pad) < A).astype(jnp.float32).reshape(1, out_pad)

    return {
        "w1": w1.astype(dtype), "b1": b1.astype(jnp.float32),
        "w2": w2.astype(dtype), "b2": b2.astype(jnp.float32),
        "w3": w3.astype(dtype), "b3": b3.astype(jnp.float32),
        "mask": mask,
        "num_actions": A,
    }


def ppo_policy_forward(obs, fused, *, tile_b=512, vmem_limit_bytes=None):
    """Returns (action_mean, value) matching PPOPolicy.forward semantics.

    tile_b: batch tile (multiple of 8).  Use the largest tile that keeps >=2
    grid steps on v7x (2 TensorCores); on v5e/v6e fewest, largest tiles win.
    vmem_limit_bytes: raise for very large tile_b on v5e (16 MiB default limit).
    """
    batch, num_obs = obs.shape
    num_actions = int(fused["num_actions"])
    hid_pad = fused["w1"].shape[1]
    out_pad = fused["w3"].shape[1]

    # Match the weight dtype (bf16 on v6e/v7x if fuse_params packed them so).
    obs = obs.astype(fused["w1"].dtype)

    # Batch tile: multiple of 8, no larger than the (padded) batch.
    tile_b = min(tile_b, _round_up(batch, 8))
    tile_b = max(8, (tile_b // 8) * 8)
    padded_batch = pl.cdiv(batch, tile_b) * tile_b
    if padded_batch != batch:
        obs = jnp.pad(obs, ((0, padded_batch - batch), (0, 0)))
    grid = (padded_batch // tile_b,)

    # Weights/biases/mask: same block every grid step -> fetched once, VMEM-resident.
    # (pl.Buffered(1) on these specs would drop the duplicate buffer; negligible
    # at ~100 KB of weights, worth revisiting if hidden_size grows on v7x.)
    def resident(arr):
        return pl.BlockSpec(arr.shape, lambda i: (0, 0))

    weight_arrays = [fused[k] for k in ("w1", "b1", "w2", "b2", "w3", "b3", "mask")]

    flops = 2 * padded_batch * (num_obs * hid_pad + hid_pad * hid_pad + hid_pad * out_pad)
    bytes_accessed = (
        obs.size * obs.dtype.itemsize
        + sum(int(a.size) * a.dtype.itemsize for a in weight_arrays)
        + padded_batch * out_pad * 4
    )
    cost = pl.CostEstimate(
        flops=flops,
        transcendentals=padded_batch * out_pad,
        bytes_accessed=bytes_accessed,
    )

    out = pl.pallas_call(
        ppo_fused_kernel,
        out_shape=jax.ShapeDtypeStruct((padded_batch, out_pad), jnp.float32),
        grid=grid,
        in_specs=[pl.BlockSpec((tile_b, num_obs), lambda i: (i, 0))]
                 + [resident(a) for a in weight_arrays],
        out_specs=pl.BlockSpec((tile_b, out_pad), lambda i: (i, 0)),
        compiler_params=pltpu.CompilerParams(
            dimension_semantics=("parallel",),
            vmem_limit_bytes=vmem_limit_bytes,
        ),
        cost_estimate=cost,
    )(obs, *weight_arrays)

    action_mean = out[:batch, :num_actions]
    value = out[:batch, num_actions:num_actions + 1]
    return action_mean, value


def init_params(key, num_obs, num_actions, hidden_size):
    """Deterministic init mimicking nn.Linear default (U(-k, k), k=1/sqrt(fan_in)).

    Weights stored as (in_features, out_features); biases as (1, out_features).
    """
    def linear(key, fan_in, fan_out):
        k = 1.0 / jnp.sqrt(jnp.float32(fan_in))
        kw, kb = jax.random.split(key)
        w = jax.random.uniform(kw, (fan_in, fan_out), jnp.float32, -k, k)
        b = jax.random.uniform(kb, (1, fan_out), jnp.float32, -k, k)
        return w, b

    keys = jax.random.split(key, 7)
    params = {}
    params["a_w1"], params["a_b1"] = linear(keys[0], num_obs, hidden_size)
    params["a_w2"], params["a_b2"] = linear(keys[1], hidden_size, hidden_size)
    params["a_w3"], params["a_b3"] = linear(keys[2], hidden_size, num_actions)
    params["c_w1"], params["c_b1"] = linear(keys[3], num_obs, hidden_size)
    params["c_w2"], params["c_b2"] = linear(keys[4], hidden_size, hidden_size)
    params["c_w3"], params["c_b3"] = linear(keys[5], hidden_size, 1)
    # log_std parameter exists in the module but is unused by forward().
    params["log_std"] = jnp.zeros((num_actions,), jnp.float32)
    return params


def reference_forward(obs, p):
    """Pure-JAX reference (unfused) for correctness check."""
    h = jnp.maximum(obs @ p["a_w1"] + p["a_b1"], 0.0)
    h = jnp.maximum(h @ p["a_w2"] + p["a_b2"], 0.0)
    mean = jnp.tanh(h @ p["a_w3"] + p["a_b3"])
    v = jnp.maximum(obs @ p["c_w1"] + p["c_b1"], 0.0)
    v = jnp.maximum(v @ p["c_w2"] + p["c_b2"], 0.0)
    value = v @ p["c_w3"] + p["c_b3"]
    return mean, value


if __name__ == "__main__":
    # Small shapes consistent with the module's forward: obs is (batch, num_obs).
    # batch is not a multiple of tile_b to exercise padding, and the grid has 4
    # steps so the "parallel" axis can shard across both v7x TensorCores.
    batch, num_obs, num_actions, hidden_size = 200, 32, 8, 32
    tile_b = 64  # small for the demo; production default is 512

    key = jax.random.PRNGKey(0)
    k_params, k_obs = jax.random.split(key)
    params = init_params(k_params, num_obs, num_actions, hidden_size)
    fused = fuse_params(params)  # f32 here; pass dtype=jnp.bfloat16 on v6e/v7x
    obs = jax.random.normal(k_obs, (batch, num_obs), jnp.float32)

    action_mean, value = ppo_policy_forward(obs, fused, tile_b=tile_b)
    jax.block_until_ready((action_mean, value))

    ref_mean, ref_value = reference_forward(obs, params)
    assert action_mean.shape == (batch, num_actions)
    assert value.shape == (batch, 1)
    assert jnp.allclose(action_mean, ref_mean, atol=1e-4, rtol=1e-4)
    assert jnp.allclose(value, ref_value, atol=1e-4, rtol=1e-4)

    print("KERNEL_OK")
</pallas_src>

<mosaic_0001>
module attributes {stable_mosaic.version = 11 : i64} {
  func.func @ppo_fused_kernel(%arg0: i32, %arg1: memref<64x32xf32, #tpu.memory_space<vmem>>, %arg2: memref<32x128xf32, #tpu.memory_space<vmem>>, %arg3: memref<1x128xf32, #tpu.memory_space<vmem>>, %arg4: memref<128x128xf32, #tpu.memory_space<vmem>>, %arg5: memref<1x128xf32, #tpu.memory_space<vmem>>, %arg6: memref<128x128xf32, #tpu.memory_space<vmem>>, %arg7: memref<1x128xf32, #tpu.memory_space<vmem>>, %arg8: memref<1x128xf32, #tpu.memory_space<vmem>>, %arg9: memref<64x128xf32, #tpu.memory_space<vmem>>) attributes {dimension_semantics = [#tpu.dimension_semantics<parallel>], iteration_bounds = array<i64: 4>, scalar_prefetch = 0 : i64, scratch_operands = 0 : i64, tpu.core_type = #tpu.core_type<tc>, window_params = [{transform_indices = @transform_0, window_bounds = array<i64: 64, 32>}, {pipeline_mode = #tpu.pipeline_mode<synchronous>, transform_indices = @transform_1, window_bounds = array<i64: 32, 128>}, {pipeline_mode = #tpu.pipeline_mode<synchronous>, transform_indices = @transform_2, window_bounds = array<i64: 1, 128>}, {pipeline_mode = #tpu.pipeline_mode<synchronous>, transform_indices = @transform_3, window_bounds = array<i64: 128, 128>}, {pipeline_mode = #tpu.pipeline_mode<synchronous>, transform_indices = @transform_4, window_bounds = array<i64: 1, 128>}, {pipeline_mode = #tpu.pipeline_mode<synchronous>, transform_indices = @transform_5, window_bounds = array<i64: 128, 128>}, {pipeline_mode = #tpu.pipeline_mode<synchronous>, transform_indices = @transform_6, window_bounds = array<i64: 1, 128>}, {pipeline_mode = #tpu.pipeline_mode<synchronous>, transform_indices = @transform_7, window_bounds = array<i64: 1, 128>}, {transform_indices = @transform_8, window_bounds = array<i64: 64, 128>}]} {
    %c0 = arith.constant 0 : index
    %c0_0 = arith.constant 0 : index
    %0 = vector.load %arg1[%c0, %c0_0] : memref<64x32xf32, #tpu.memory_space<vmem>>, vector<64x32xf32>
    %c0_1 = arith.constant 0 : index
    %c0_2 = arith.constant 0 : index
    %1 = vector.load %arg2[%c0_1, %c0_2] : memref<32x128xf32, #tpu.memory_space<vmem>>, vector<32x128xf32>
    %cst = arith.constant dense<0.000000e+00> : vector<64x128xf32>
    %2 = tpu.matmul %0, %1, %cst {dimension_numbers = #tpu.dot_dimension_numbers<[1], [0], [0], [1], [0, 0, 1, 1], [], []>} : vector<64x32xf32>, vector<32x128xf32>, vector<64x128xf32> -> vector<64x128xf32>
    %c0_3 = arith.constant 0 : index
    %c0_4 = arith.constant 0 : index
    %3 = vector.load %arg3[%c0_3, %c0_4] : memref<1x128xf32, #tpu.memory_space<vmem>>, vector<1x128xf32>
    %4 = vector.broadcast %3 : vector<1x128xf32> to vector<64x128xf32>
    %5 = arith.addf %2, %4 : vector<64x128xf32>
    %cst_5 = arith.constant 0.000000e+00 : f32
    %6 = vector.broadcast %cst_5 : f32 to vector<64x128xf32>
    %7 = arith.maximumf %5, %6 : vector<64x128xf32>
    %c0_6 = arith.constant 0 : index
    %c0_7 = arith.constant 0 : index
    %8 = vector.load %arg4[%c0_6, %c0_7] : memref<128x128xf32, #tpu.memory_space<vmem>>, vector<128x128xf32>
    %cst_8 = arith.constant dense<0.000000e+00> : vector<64x128xf32>
    %9 = tpu.matmul %7, %8, %cst_8 {dimension_numbers = #tpu.dot_dimension_numbers<[1], [0], [0], [1], [0, 0, 1, 1], [], []>} : vector<64x128xf32>, vector<128x128xf32>, vector<64x128xf32> -> vector<64x128xf32>
    %c0_9 = arith.constant 0 : index
    %c0_10 = arith.constant 0 : index
    %10 = vector.load %arg5[%c0_9, %c0_10] : memref<1x128xf32, #tpu.memory_space<vmem>>, vector<1x128xf32>
    %11 = vector.broadcast %10 : vector<1x128xf32> to vector<64x128xf32>
    %12 = arith.addf %9, %11 : vector<64x128xf32>
    %cst_11 = arith.constant 0.000000e+00 : f32
    %13 = vector.broadcast %cst_11 : f32 to vector<64x128xf32>
    %14 = arith.maximumf %12, %13 : vector<64x128xf32>
    %c0_12 = arith.constant 0 : index
    %c0_13 = arith.constant 0 : index
    %15 = vector.load %arg6[%c0_12, %c0_13] : memref<128x128xf32, #tpu.memory_space<vmem>>, vector<128x128xf32>
    %cst_14 = arith.constant dense<0.000000e+00> : vector<64x128xf32>
    %16 = tpu.matmul %14, %15, %cst_14 {dimension_numbers = #tpu.dot_dimension_numbers<[1], [0], [0], [1], [0, 0, 1, 1], [], []>} : vector<64x128xf32>, vector<128x128xf32>, vector<64x128xf32> -> vector<64x128xf32>
    %c0_15 = arith.constant 0 : index
    %c0_16 = arith.constant 0 : index
    %17 = vector.load %arg7[%c0_15, %c0_16] : memref<1x128xf32, #tpu.memory_space<vmem>>, vector<1x128xf32>
    %18 = vector.broadcast %17 : vector<1x128xf32> to vector<64x128xf32>
    %19 = arith.addf %16, %18 : vector<64x128xf32>
    %c0_17 = arith.constant 0 : index
    %c0_18 = arith.constant 0 : index
    %20 = vector.load %arg8[%c0_17, %c0_18] : memref<1x128xf32, #tpu.memory_space<vmem>>, vector<1x128xf32>
    %21 = math.tanh %19 : vector<64x128xf32>
    %22 = arith.subf %21, %19 : vector<64x128xf32>
    %23 = vector.broadcast %20 : vector<1x128xf32> to vector<64x128xf32>
    %24 = arith.mulf %23, %22 : vector<64x128xf32>
    %25 = arith.addf %19, %24 : vector<64x128xf32>
    %c0_19 = arith.constant 0 : index
    %c0_20 = arith.constant 0 : index
    %26 = vector.load %arg9[%c0_19, %c0_20] : memref<64x128xf32, #tpu.memory_space<vmem>>, vector<64x128xf32>
    tpu.vector_store %arg9[%c0_19, %c0_20], %25 {strides = array<i32>} : memref<64x128xf32, #tpu.memory_space<vmem>>, vector<64x128xf32>,
    return
  }
  func.func @transform_0(%arg0: i32) -> (i32, i32) {
    %c0_i32 = arith.constant 0 : i32
    %c0_i32_0 = arith.constant 0 : i32
    return %arg0, %c0_i32 : i32, i32
  }
  func.func @transform_1(%arg0: i32) -> (i32, i32) {
    %c0_i32 = arith.constant 0 : i32
    %c0_i32_0 = arith.constant 0 : i32
    %c0_i32_1 = arith.constant 0 : i32
    return %c0_i32, %c0_i32_0 : i32, i32
  }
  func.func @transform_2(%arg0: i32) -> (i32, i32) {
    %c0_i32 = arith.constant 0 : i32
    %c0_i32_0 = arith.constant 0 : i32
    %c0_i32_1 = arith.constant 0 : i32
    return %c0_i32, %c0_i32_0 : i32, i32
  }
  func.func @transform_3(%arg0: i32) -> (i32, i32) {
    %c0_i32 = arith.constant 0 : i32
    %c0_i32_0 = arith.constant 0 : i32
    %c0_i32_1 = arith.constant 0 : i32
    return %c0_i32, %c0_i32_0 : i32, i32
  }
  func.func @transform_4(%arg0: i32) -> (i32, i32) {
    %c0_i32 = arith.constant 0 : i32
    %c0_i32_0 = arith.constant 0 : i32
    %c0_i32_1 = arith.constant 0 : i32
    return %c0_i32, %c0_i32_0 : i32, i32
  }
  func.func @transform_5(%arg0: i32) -> (i32, i32) {
    %c0_i32 = arith.constant 0 : i32
    %c0_i32_0 = arith.constant 0 : i32
    %c0_i32_1 = arith.constant 0 : i32
    return %c0_i32, %c0_i32_0 : i32, i32
  }
  func.func @transform_6(%arg0: i32) -> (i32, i32) {
    %c0_i32 = arith.constant 0 : i32
    %c0_i32_0 = arith.constant 0 : i32
    %c0_i32_1 = arith.constant 0 : i32
    return %c0_i32, %c0_i32_0 : i32, i32
  }
  func.func @transform_7(%arg0: i32) -> (i32, i32) {
    %c0_i32 = arith.constant 0 : i32
    %c0_i32_0 = arith.constant 0 : i32
    %c0_i32_1 = arith.constant 0 : i32
    return %c0_i32, %c0_i32_0 : i32, i32
  }
  func.func @transform_8(%arg0: i32) -> (i32, i32) {
    %c0_i32 = arith.constant 0 : i32
    %c0_i32_0 = arith.constant 0 : i32
    return %arg0, %c0_i32 : i32, i32
  }
}

</mosaic_0001>

<llo_original>
// kernel: tpu_custom_call.1
$region0: #{tpu_custom_call.1}
  #allocation0 [shape = 'u32[]', space=smem, size = 0x4, offset = 0x4, fixed_abs, tag = 'smem constant byte address 0x4 - core index']
  #allocation1 [shape = 'u32[72,128]{1,0:T(1,128)}', space=vmem, size = 0x9000, scoped, tag = 'internal scratch']
  %s0 = inlined_call_operand.vmem [shape: f32[256,32], index: 0, kind: input, shape index: {}]
  %s1 = inlined_call_operand.vmem [shape: f32[32,128], index: 1, kind: input, shape index: {}]
  %s2 = inlined_call_operand.vmem [shape: f32[1,128], index: 2, kind: input, shape index: {}]
  %s3 = inlined_call_operand.vmem [shape: f32[128,128], index: 3, kind: input, shape index: {}]
  %s4 = inlined_call_operand.vmem [shape: f32[1,128], index: 4, kind: input, shape index: {}]
  %s5 = inlined_call_operand.vmem [shape: f32[128,128], index: 5, kind: input, shape index: {}]
  %s6 = inlined_call_operand.vmem [shape: f32[1,128], index: 6, kind: input, shape index: {}]
  %s7 = inlined_call_operand.vmem [shape: f32[1,128], index: 7, kind: input, shape index: {}]
  %s8 = inlined_call_operand.hbm [shape: f32[256,128], index: 8, kind: output, shape index: {}]
  %s9 = sld [smem:[#allocation0]]
  $region65: #{tpu_custom_call.1} parent=0
    _
  %s11 = ssub.s32 1, %s9
  %s12 = scalar_select 0, %s11, %s9
  $region1: #{tpu_custom_call.1} parent=0
    #allocation2 [shape = 'u8[65536]{0}', space=vmem, size = 0x10000, scoped, tag = 'output window, operand 0']
    #allocation3 [shape = 's32[2]{0}', space=sflag, size = 0x8, scoped, tag = 'scoped memory for tpu_custom_call.1']
    %13 = vsyncpa [#allocation3], 0
    %s14 = scalar_lea.sflag [#allocation3], 1
    %15 = vsyncpa %s14, 0
    loop: start=0, step=1, limit=6
    $region2: #{tpu_custom_call.1} parent=1 // loop_pre_header
      _
    $region3: #{tpu_custom_call.1} parent=1 // loop_header
      %s17 = sphi 0, %s21
      %p18 = scmp.ge.s32.totalorder %s17, 6
      %s27 = sphi 0, %s29
      %s30 = sphi 0, %s27
      %s31 = sphi 0, %s30
      %s47 = sphi 0, %s31
      %s51 = sphi 0, %s51
      %s53 = sphi 0, %s51
      %s54 = sphi 0, %s53
      %s68 = sphi 0, %s54
      %s72 = sphi 0, %s72
      %s74 = sphi 0, %s72
      %s75 = sphi 0, %s74
      %s89 = sphi 0, %s75
      %s93 = sphi 0, %s93
      %s95 = sphi 0, %s93
      %s96 = sphi 0, %s95
      %s110 = sphi 0, %s96
      %s114 = sphi 0, %s114
      %s116 = sphi 0, %s114
      %s117 = sphi 0, %s116
      %s131 = sphi 0, %s117
      %s135 = sphi 0, %s135
      %s137 = sphi 0, %s135
      %s138 = sphi 0, %s137
      %s152 = sphi 0, %s138
      %s156 = sphi 0, %s156
      %s158 = sphi 0, %s156
      %s159 = sphi 0, %s158
      %s173 = sphi 0, %s159
      %s177 = sphi 0, %s177
      %s179 = sphi 0, %s177
      %s180 = sphi 0, %s179
      %s194 = sphi 0, %s180
      %s200 = sphi 0, %s202
      %s203 = sphi 0, %s200
      %s204 = sphi 0, %s203
      %s220 = sphi 0, %s204
    $region4: #{tpu_custom_call.1} parent=1 // loop_header_branch
      %20 = sbr.rel (%p18) target = $region8
    $region5: #{tpu_custom_call.1} parent=1 // loop_body
      %s22 = ssub.s32 %s17, 1
      %s23 = ssub.s32 %s17, 2
      %s24 = sadd.s32 %s17, 1
      %s25 = ssub.s32 %s17, %s24
      %p26 = scmp.eq.s32.totalorder %s25, 0
      %s28 = sadd.s32 %s27, 1
      %s29 = scalar_select %p26, %s27, %s28
      %p32 = pneg %p26
      %p33 = scmp.eq.s32.totalorder %s17, 3
      %p34 = por %p32, %p33
      %p35 = scmp.ne.s32.totalorder %s27, %s30
      %p36 = scmp.eq.s32.totalorder %s17, 0
      %p37 = por %p35, %p36
      %p38 = scmp.ne.s32.totalorder %s27, %s30
      %p39 = scmp.eq.s32.totalorder %s22, 3
      %p40 = por %p38, %p39
      %p41 = scmp.ne.s32.totalorder %s30, %s31
      %p42 = scmp.eq.s32.totalorder %s22, 0
      %p43 = por %p41, %p42
      %p44 = scmp.ne.s32.totalorder %s30, %s31
      %p45 = scmp.eq.s32.totalorder %s23, 3
      %p46 = por %p44, %p45
      %p48 = scmp.ne.s32.totalorder %s31, %s47
      %p49 = scmp.eq.s32.totalorder %s23, 0
      %p50 = por %p48, %p49
      %s52 = sadd.s32 %s51, 1
      %p55 = scmp.eq.s32.totalorder %s17, 3
      %p56 = scmp.ne.s32.totalorder %s51, %s53
      %p57 = scmp.eq.s32.totalorder %s17, 0
      %p58 = por %p56, %p57
      %p59 = scmp.ne.s32.totalorder %s51, %s53
      %p60 = scmp.eq.s32.totalorder %s22, 3
      %p61 = por %p59, %p60
      %p62 = scmp.ne.s32.totalorder %s53, %s54
      %p63 = scmp.eq.s32.totalorder %s22, 0
      %p64 = por %p62, %p63
      %p65 = scmp.ne.s32.totalorder %s53, %s54
      %p66 = scmp.eq.s32.totalorder %s23, 3
      %p67 = por %p65, %p66
      %p69 = scmp.ne.s32.totalorder %s54, %s68
      %p70 = scmp.eq.s32.totalorder %s23, 0
      %p71 = por %p69, %p70
      %s73 = sadd.s32 %s72, 1
      %p76 = scmp.eq.s32.totalorder %s17, 3
      %p77 = scmp.ne.s32.totalorder %s72, %s74
      %p78 = scmp.eq.s32.totalorder %s17, 0
      %p79 = por %p77, %p78
      %p80 = scmp.ne.s32.totalorder %s72, %s74
      %p81 = scmp.eq.s32.totalorder %s22, 3
      %p82 = por %p80, %p81
      %p83 = scmp.ne.s32.totalorder %s74, %s75
      %p84 = scmp.eq.s32.totalorder %s22, 0
      %p85 = por %p83, %p84
      %p86 = scmp.ne.s32.totalorder %s74, %s75
      %p87 = scmp.eq.s32.totalorder %s23, 3
      %p88 = por %p86, %p87
      %p90 = scmp.ne.s32.totalorder %s75, %s89
      %p91 = scmp.eq.s32.totalorder %s23, 0
      %p92 = por %p90, %p91
      %s94 = sadd.s32 %s93, 1
      %p97 = scmp.eq.s32.totalorder %s17, 3
      %p98 = scmp.ne.s32.totalorder %s93, %s95
      %p99 = scmp.eq.s32.totalorder %s17, 0
      %p100 = por %p98, %p99
      %p101 = scmp.ne.s32.totalorder %s93, %s95
      %p102 = scmp.eq.s32.totalorder %s22, 3
      %p103 = por %p101, %p102
      %p104 = scmp.ne.s32.totalorder %s95, %s96
      %p105 = scmp.eq.s32.totalorder %s22, 0
      %p106 = por %p104, %p105
      %p107 = scmp.ne.s32.totalorder %s95, %s96
      %p108 = scmp.eq.s32.totalorder %s23, 3
      %p109 = por %p107, %p108
      %p111 = scmp.ne.s32.totalorder %s96, %s110
      %p112 = scmp.eq.s32.totalorder %s23, 0
      %p113 = por %p111, %p112
      %s115 = sadd.s32 %s114, 1
      %p118 = scmp.eq.s32.totalorder %s17, 3
      %p119 = scmp.ne.s32.totalorder %s114, %s116
      %p120 = scmp.eq.s32.totalorder %s17, 0
      %p121 = por %p119, %p120
      %p122 = scmp.ne.s32.totalorder %s114, %s116
      %p123 = scmp.eq.s32.totalorder %s22, 3
      %p124 = por %p122, %p123
      %p125 = scmp.ne.s32.totalorder %s116, %s117
      %p126 = scmp.eq.s32.totalorder %s22, 0
      %p127 = por %p125, %p126
      %p128 = scmp.ne.s32.totalorder %s116, %s117
      %p129 = scmp.eq.s32.totalorder %s23, 3
      %p130 = por %p128, %p129
      %p132 = scmp.ne.s32.totalorder %s117, %s131
      %p133 = scmp.eq.s32.totalorder %s23, 0
      %p134 = por %p132, %p133
      %s136 = sadd.s32 %s135, 1
      %p139 = scmp.eq.s32.totalorder %s17, 3
      %p140 = scmp.ne.s32.totalorder %s135, %s137
      %p141 = scmp.eq.s32.totalorder %s17, 0
      %p142 = por %p140, %p141
      %p143 = scmp.ne.s32.totalorder %s135, %s137
      %p144 = scmp.eq.s32.totalorder %s22, 3
      %p145 = por %p143, %p144
      %p146 = scmp.ne.s32.totalorder %s137, %s138
      %p147 = scmp.eq.s32.totalorder %s22, 0
      %p148 = por %p146, %p147
      %p149 = scmp.ne.s32.totalorder %s137, %s138
      %p150 = scmp.eq.s32.totalorder %s23, 3
      %p151 = por %p149, %p150
      %p153 = scmp.ne.s32.totalorder %s138, %s152
      %p154 = scmp.eq.s32.totalorder %s23, 0
      %p155 = por %p153, %p154
      %s157 = sadd.s32 %s156, 1
      %p160 = scmp.eq.s32.totalorder %s17, 3
      %p161 = scmp.ne.s32.totalorder %s156, %s158
      %p162 = scmp.eq.s32.totalorder %s17, 0
      %p163 = por %p161, %p162
      %p164 = scmp.ne.s32.totalorder %s156, %s158
      %p165 = scmp.eq.s32.totalorder %s22, 3
      %p166 = por %p164, %p165
      %p167 = scmp.ne.s32.totalorder %s158, %s159
      %p168 = scmp.eq.s32.totalorder %s22, 0
      %p169 = por %p167, %p168
      %p170 = scmp.ne.s32.totalorder %s158, %s159
      %p171 = scmp.eq.s32.totalorder %s23, 3
      %p172 = por %p170, %p171
      %p174 = scmp.ne.s32.totalorder %s159, %s173
      %p175 = scmp.eq.s32.totalorder %s23, 0
      %p176 = por %p174, %p175
      %s178 = sadd.s32 %s177, 1
      %p181 = scmp.eq.s32.totalorder %s17, 3
      %p182 = scmp.ne.s32.totalorder %s177, %s179
      %p183 = scmp.eq.s32.totalorder %s17, 0
      %p184 = por %p182, %p183
      %p185 = scmp.ne.s32.totalorder %s177, %s179
      %p186 = scmp.eq.s32.totalorder %s22, 3
      %p187 = por %p185, %p186
      %p188 = scmp.ne.s32.totalorder %s179, %s180
      %p189 = scmp.eq.s32.totalorder %s22, 0
      %p190 = por %p188, %p189
      %p191 = scmp.ne.s32.totalorder %s179, %s180
      %p192 = scmp.eq.s32.totalorder %s23, 3
      %p193 = por %p191, %p192
      %p195 = scmp.ne.s32.totalorder %s180, %s194
      %p196 = scmp.eq.s32.totalorder %s23, 0
      %p197 = por %p195, %p196
      %s198 = ssub.s32 %s17, %s24
      %p199 = scmp.eq.s32.totalorder %s198, 0
      %s201 = sadd.s32 %s200, 1
      %s202 = scalar_select %p199, %s200, %s201
      %p205 = pneg %p199
      %p206 = scmp.eq.s32.totalorder %s17, 3
      %p207 = por %p205, %p206
      %p208 = scmp.ne.s32.totalorder %s200, %s203
      %p209 = scmp.eq.s32.totalorder %s17, 0
      %p210 = por %p208, %p209
      %p211 = scmp.ne.s32.totalorder %s200, %s203
      %p212 = scmp.eq.s32.totalorder %s22, 3
      %p213 = por %p211, %p212
      %p214 = scmp.ne.s32.totalorder %s203, %s204
      %p215 = scmp.eq.s32.totalorder %s22, 0
      %p216 = por %p214, %p215
      %p217 = scmp.ne.s32.totalorder %s203, %s204
      %p218 = scmp.eq.s32.totalorder %s23, 3
      %p219 = por %p217, %p218
      %p221 = scmp.ne.s32.totalorder %s204, %s220
      %p222 = scmp.eq.s32.totalorder %s23, 0
      %p223 = por %p221, %p222
      %p224 = scmp.le.s32.totalorder 1, %s17
      %p225 = scmp.lt.s32.totalorder %s17, 5
      %p226 = pnand %p224, %p225
      %p227 = pneg %p226
      // Predicated region
      $region9: #{tpu_custom_call.1} parent=5 // pred_check
        _
      $region10: #{tpu_custom_call.1} parent=5 // pred_check_branch
        %229 = sbr.rel (%p226) target = $region12
      $region11: #{tpu_custom_call.1} parent=5 // pred_region
        %s230 = ssub.s32 %s17, 1
        // Predicated region
        $region13: #{tpu_custom_call.1} parent=11 // pred_check
          %p231 = pneg %p64
        $region14: #{tpu_custom_call.1} parent=11 // pred_check_branch
          %233 = sbr.rel (%p231) target = $region16
        $region15: #{tpu_custom_call.1} parent=11 // pred_region
          _
        $region16: #{tpu_custom_call.1} parent=11 // pred_fallthru
          _
        // Predicated region
        $region17: #{tpu_custom_call.1} parent=11 // pred_check
          %p234 = pneg %p85
        $region18: #{tpu_custom_call.1} parent=11 // pred_check_branch
          %236 = sbr.rel (%p234) target = $region20
        $region19: #{tpu_custom_call.1} parent=11 // pred_region
          _
        $region20: #{tpu_custom_call.1} parent=11 // pred_fallthru
          _
        // Predicated region
        $region21: #{tpu_custom_call.1} parent=11 // pred_check
          %p237 = pneg %p106
        $region22: #{tpu_custom_call.1} parent=11 // pred_check_branch
          %239 = sbr.rel (%p237) target = $region24
        $region23: #{tpu_custom_call.1} parent=11 // pred_region
          _
        $region24: #{tpu_custom_call.1} parent=11 // pred_fallthru
          _
        // Predicated region
        $region25: #{tpu_custom_call.1} parent=11 // pred_check
          %p240 = pneg %p127
        $region26: #{tpu_custom_call.1} parent=11 // pred_check_branch
          %242 = sbr.rel (%p240) target = $region28
        $region27: #{tpu_custom_call.1} parent=11 // pred_region
          _
        $region28: #{tpu_custom_call.1} parent=11 // pred_fallthru
          _
        // Predicated region
        $region29: #{tpu_custom_call.1} parent=11 // pred_check
          %p243 = pneg %p148
        $region30: #{tpu_custom_call.1} parent=11 // pred_check_branch
          %245 = sbr.rel (%p243) target = $region32
        $region31: #{tpu_custom_call.1} parent=11 // pred_region
          _
        $region32: #{tpu_custom_call.1} parent=11 // pred_fallthru
          _
        // Predicated region
        $region33: #{tpu_custom_call.1} parent=11 // pred_check
          %p246 = pneg %p169
        $region34: #{tpu_custom_call.1} parent=11 // pred_check_branch
          %248 = sbr.rel (%p246) target = $region36
        $region35: #{tpu_custom_call.1} parent=11 // pred_region
          _
        $region36: #{tpu_custom_call.1} parent=11 // pred_fallthru
          _
        // Predicated region
        $region37: #{tpu_custom_call.1} parent=11 // pred_check
          %p249 = pneg %p190
        $region38: #{tpu_custom_call.1} parent=11 // pred_check_branch
          %251 = sbr.rel (%p249) target = $region40
        $region39: #{tpu_custom_call.1} parent=11 // pred_region
          _
        $region40: #{tpu_custom_call.1} parent=11 // pred_fallthru
          _
      $region12: #{tpu_custom_call.1} parent=5 // pred_fallthru
        _
      %p252 = scmp.lt.s32.totalorder %s17, 4
      // Predicated region
      $region41: #{tpu_custom_call.1} parent=5 // pred_check
        %p253 = pneg %p252
      $region42: #{tpu_custom_call.1} parent=5 // pred_check_branch
        %255 = sbr.rel (%p253) target = $region44
      $region43: #{tpu_custom_call.1} parent=5 // pred_region
        // Predicated region
        $region45: #{tpu_custom_call.1} parent=43 // pred_check
          %p256 = pneg %p37
        $region46: #{tpu_custom_call.1} parent=43 // pred_check_branch
          %258 = sbr.rel (%p256) target = $region48
        $region47: #{tpu_custom_call.1} parent=43 // pred_region
          %s259 = smul.u32 8, %s17
          %p260 = scmp.lt.s32.totalorder %s259, 31
          %s261 = scalar_select %p260, %s259, 31
          %s262 = smul.addr %s261, 8
          %s263 = scalar_lea.vmem %s0, %s262
          %s264 = smul.u32 8, %s17
        $region48: #{tpu_custom_call.1} parent=43 // pred_fallthru
          _
      $region44: #{tpu_custom_call.1} parent=5 // pred_fallthru
        _
      %p265 = scmp.le.s32.totalorder 1, %s17
      %p266 = scmp.lt.s32.totalorder %s17, 5
      %p267 = pnand %p265, %p266
      %p268 = pneg %p267
      // Predicated region
      $region49: #{tpu_custom_call.1} parent=5 // pred_check
        _
      $region50: #{tpu_custom_call.1} parent=5 // pred_check_branch
        %270 = sbr.rel (%p267) target = $region52
      $region51: #{tpu_custom_call.1} parent=5 // pred_region
        %s271 = ssub.s32 %s17, 1
        %s272 = smul.u32 8, %s22
        %p273 = scmp.lt.s32.totalorder %s272, 31
        %s274 = scalar_select %p273, %s272, 31
        %s275 = smul.addr %s274, 8
        %s276 = scalar_lea.vmem %s0, %s275
        %p277 = pneg %p43
        %p278 = pneg %p40
        %p279 = pneg %p64
        %p280 = pneg %p61
        %p281 = pneg %p85
        %p282 = pneg %p82
        %p283 = pneg %p106
        %p284 = pneg %p103
        %p285 = pneg %p127
        %p286 = pneg %p124
        %p287 = pneg %p148
        %p288 = pneg %p145
        %p289 = pneg %p169
        %p290 = pneg %p166
        %p291 = pneg %p190
        %p292 = pneg %p187
        %p293 = pneg %p216
        %p294 = pneg %p213
        %s295 = sand.u32 %s203, 1
        %s296 = scalar_lea.sflag [#allocation3], %s295
        %s297 = sand.u32 %s203, 1
        %s298 = smul.addr %s297, 64
        %s299 = scalar_lea.vmem [#allocation2], %s298
        %s300 = smul.u32 8, %s22
        %p301 = scmp.lt.s32.totalorder %s300, 31
        %s302 = scalar_select %p301, %s300, 31
        %s303 = smul.addr %s302, 8
        %s304 = scalar_lea.vmem %s0, %s303
        %s305 = smul.u32 8, %s22
        %s306 = smul.u32 8, %s22
        %v307 = vld [vmem:[%s304] sm:$0xff]
        %v308 = vld [vmem:[%s304 + $0x8] sm:$0xff]
        %v309 = vld [vmem:[%s304 + $0x10] sm:$0xff]
        %v310 = vld [vmem:[%s304 + $0x18] sm:$0xff]
        %v311 = vld [vmem:[%s304 + $0x20] sm:$0xff]
        %v312 = vld [vmem:[%s304 + $0x28] sm:$0xff]
        %v313 = vld [vmem:[%s304 + $0x30] sm:$0xff]
        %v314 = vld [vmem:[%s304 + $0x38] sm:$0xff]
        %v315 = vld [vmem:[%s1] sm:$0xff]
        %v316 = vld [vmem:[%s1 + $0x8] sm:$0xff]
        %v317 = vld [vmem:[%s1 + $0x10] sm:$0xff]
        %v318 = vld [vmem:[%s1 + $0x18] sm:$0xff]
        %v319 = vld [vmem:[%s2] sm:$0x1]
        %v321 = vperm.slane %v319, 0
        %vm323 = vcmask 261120
        %v325 = vsel %vm323, %v307, 0
        %v328 = vsel %vm323, %v308, 0
        %v331 = vsel %vm323, %v309, 0
        %v334 = vsel %vm323, %v310, 0
        %v337 = vsel %vm323, %v311, 0
        %v340 = vsel %vm323, %v312, 0
        %v343 = vsel %vm323, %v313, 0
        %v346 = vsel %vm323, %v314, 0
        %348 = vmatpush.msra.mxu0 0.0
        %349 = vmatpush.msra.mxu0 0.0
        %350 = vmatpush.msra.mxu0 0.0
        %351 = vmatpush.msra.mxu0 0.0
        %352 = vmatpush.msra.mxu0 0.0
        %353 = vmatpush.msra.mxu0 0.0
        %354 = vmatpush.msra.mxu0 0.0
        %355 = vmatpush.msra.mxu0 0.0
        %356 = vmatpush.msra.mxu0 0.0
        %357 = vmatpush.msra.mxu0 0.0
        %358 = vmatpush.msra.mxu0 0.0
        %359 = vmatpush.msra.mxu0 0.0
        %360 = vmatpush.msra.mxu0 %v318
        %361 = vmatpush.msra.mxu0 %v317
        %362 = vmatpush.msra.mxu0 %v316
        %363 = vmatpush.msra.mxu0 %v315
        %364 = vmatmul.f32.gmra.mxu0 %v325
        %v365 = vpop.f32.mrf.mxu0
        %v366 = vadd.f32 %v321, %v365
        %367 = vmatmul.f32.gmra.mxu0 %v328
        %v368 = vpop.f32.mrf.mxu0
        %v369 = vadd.f32 %v321, %v368
        %370 = vmatmul.f32.gmra.mxu0 %v331
        %v371 = vpop.f32.mrf.mxu0
        %v372 = vadd.f32 %v321, %v371
        %373 = vmatmul.f32.gmra.mxu0 %v334
        %v374 = vpop.f32.mrf.mxu0
        %v375 = vadd.f32 %v321, %v374
        %376 = vmatmul.f32.gmra.mxu0 %v337
        %v377 = vpop.f32.mrf.mxu0
        %v378 = vadd.f32 %v321, %v377
        %379 = vmatmul.f32.gmra.mxu0 %v340
        %v380 = vpop.f32.mrf.mxu0
        %v381 = vadd.f32 %v321, %v380
        %382 = vmatmul.f32.gmra.mxu0 %v343
        %v383 = vpop.f32.mrf.mxu0
        %v384 = vadd.f32 %v321, %v383
        %385 = vmatmul.f32.gmra.mxu0 %v346
        %v386 = vpop.f32.mrf.mxu0
        %v387 = vadd.f32 %v321, %v386
        %388 = vdwg.mxu0
        %v389 = vmax.f32 %v366, 0.0
        %v390 = vmax.f32 %v369, 0.0
        %v391 = vmax.f32 %v372, 0.0
        %v392 = vmax.f32 %v375, 0.0
        %v393 = vmax.f32 %v378, 0.0
        %v394 = vmax.f32 %v381, 0.0
        %v395 = vmax.f32 %v384, 0.0
        %v396 = vmax.f32 %v387, 0.0
        %v397 = vld [vmem:[%s3] sm:$0xff]
        %v398 = vld [vmem:[%s3 + $0x8] sm:$0xff]
        %v399 = vld [vmem:[%s3 + $0x10] sm:$0xff]
        %v400 = vld [vmem:[%s3 + $0x18] sm:$0xff]
        %v401 = vld [vmem:[%s3 + $0x20] sm:$0xff]
        %v402 = vld [vmem:[%s3 + $0x28] sm:$0xff]
        %v403 = vld [vmem:[%s3 + $0x30] sm:$0xff]
        %v404 = vld [vmem:[%s3 + $0x38] sm:$0xff]
        %v405 = vld [vmem:[%s3 + $0x40] sm:$0xff]
        %v406 = vld [vmem:[%s3 + $0x48] sm:$0xff]
        %v407 = vld [vmem:[%s3 + $0x50] sm:$0xff]
        %v408 = vld [vmem:[%s3 + $0x58] sm:$0xff]
        %v409 = vld [vmem:[%s3 + $0x60] sm:$0xff]
        %v410 = vld [vmem:[%s3 + $0x68] sm:$0xff]
        %v411 = vld [vmem:[%s3 + $0x70] sm:$0xff]
        %v412 = vld [vmem:[%s3 + $0x78] sm:$0xff]
        %v413 = vld [vmem:[%s4] sm:$0x1]
        %v415 = vperm.slane %v413, 0
        %417 = vmatpush.msra.mxu0 %v412
        %418 = vmatpush.msra.mxu0 %v411
        %419 = vmatpush.msra.mxu0 %v410
        %420 = vmatpush.msra.mxu0 %v409
        %421 = vmatpush.msra.mxu0 %v408
        %422 = vmatpush.msra.mxu0 %v407
        %423 = vmatpush.msra.mxu0 %v406
        %424 = vmatpush.msra.mxu0 %v405
        %425 = vmatpush.msra.mxu0 %v404
        %426 = vmatpush.msra.mxu0 %v403
        %427 = vmatpush.msra.mxu0 %v402
        %428 = vmatpush.msra.mxu0 %v401
        %429 = vmatpush.msra.mxu0 %v400
        %430 = vmatpush.msra.mxu0 %v399
        %431 = vmatpush.msra.mxu0 %v398
        %432 = vmatpush.msra.mxu0 %v397
        %433 = vmatmul.f32.gmra.mxu0 %v389
        %v434 = vpop.f32.mrf.mxu0
        %v435 = vadd.f32 %v415, %v434
        %436 = vmatmul.f32.gmra.mxu0 %v390
        %v437 = vpop.f32.mrf.mxu0
        %v438 = vadd.f32 %v415, %v437
        %439 = vmatmul.f32.gmra.mxu0 %v391
        %v440 = vpop.f32.mrf.mxu0
        %v441 = vadd.f32 %v415, %v440
        %442 = vmatmul.f32.gmra.mxu0 %v392
        %v443 = vpop.f32.mrf.mxu0
        %v444 = vadd.f32 %v415, %v443
        %445 = vmatmul.f32.gmra.mxu0 %v393
        %v446 = vpop.f32.mrf.mxu0
        %v447 = vadd.f32 %v415, %v446
        %448 = vmatmul.f32.gmra.mxu0 %v394
        %v449 = vpop.f32.mrf.mxu0
        %v450 = vadd.f32 %v415, %v449
        %451 = vmatmul.f32.gmra.mxu0 %v395
        %v452 = vpop.f32.mrf.mxu0
        %v453 = vadd.f32 %v415, %v452
        %454 = vmatmul.f32.gmra.mxu0 %v396
        %v455 = vpop.f32.mrf.mxu0
        %v456 = vadd.f32 %v415, %v455
        %457 = vdwg.mxu0
        %v458 = vmax.f32 %v435, 0.0
        %v459 = vmax.f32 %v438, 0.0
        %v460 = vmax.f32 %v441, 0.0
        %v461 = vmax.f32 %v444, 0.0
        %v462 = vmax.f32 %v447, 0.0
        %v463 = vmax.f32 %v450, 0.0
        %v464 = vmax.f32 %v453, 0.0
        %v465 = vmax.f32 %v456, 0.0
        %v466 = vld [vmem:[%s5] sm:$0xff]
        %v467 = vld [vmem:[%s5 + $0x8] sm:$0xff]
        %v468 = vld [vmem:[%s5 + $0x10] sm:$0xff]
        %v469 = vld [vmem:[%s5 + $0x18] sm:$0xff]
        %v470 = vld [vmem:[%s5 + $0x20] sm:$0xff]
        %v471 = vld [vmem:[%s5 + $0x28] sm:$0xff]
        %v472 = vld [vmem:[%s5 + $0x30] sm:$0xff]
        %v473 = vld [vmem:[%s5 + $0x38] sm:$0xff]
        %v474 = vld [vmem:[%s5 + $0x40] sm:$0xff]
        %v475 = vld [vmem:[%s5 + $0x48] sm:$0xff]
        %v476 = vld [vmem:[%s5 + $0x50] sm:$0xff]
        %v477 = vld [vmem:[%s5 + $0x58] sm:$0xff]
        %v478 = vld [vmem:[%s5 + $0x60] sm:$0xff]
        %v479 = vld [vmem:[%s5 + $0x68] sm:$0xff]
        %v480 = vld [vmem:[%s5 + $0x70] sm:$0xff]
        %v481 = vld [vmem:[%s5 + $0x78] sm:$0xff]
        %v482 = vld [vmem:[%s6] sm:$0x1]
        %v484 = vperm.slane %v482, 0
        %486 = vmatpush.msra.mxu0 %v481
        %487 = vmatpush.msra.mxu0 %v480
        %488 = vmatpush.msra.mxu0 %v479
        %489 = vmatpush.msra.mxu0 %v478
        %490 = vmatpush.msra.mxu0 %v477
        %491 = vmatpush.msra.mxu0 %v476
        %492 = vmatpush.msra.mxu0 %v475
        %493 = vmatpush.msra.mxu0 %v474
        %494 = vmatpush.msra.mxu0 %v473
        %495 = vmatpush.msra.mxu0 %v472
        %496 = vmatpush.msra.mxu0 %v471
        %497 = vmatpush.msra.mxu0 %v470
        %498 = vmatpush.msra.mxu0 %v469
        %499 = vmatpush.msra.mxu0 %v468
        %500 = vmatpush.msra.mxu0 %v467
        %501 = vmatpush.msra.mxu0 %v466
        %502 = vmatmul.f32.gmra.mxu0 %v458
        %v503 = vpop.f32.mrf.mxu0
        %v504 = vadd.f32 %v484, %v503
        %505 = vmatmul.f32.gmra.mxu0 %v459
        %v506 = vpop.f32.mrf.mxu0
        %v507 = vadd.f32 %v484, %v506
        %508 = vmatmul.f32.gmra.mxu0 %v460
        %v509 = vpop.f32.mrf.mxu0
        %v510 = vadd.f32 %v484, %v509
        %511 = vmatmul.f32.gmra.mxu0 %v461
        %v512 = vpop.f32.mrf.mxu0
        %v513 = vadd.f32 %v484, %v512
        %514 = vmatmul.f32.gmra.mxu0 %v462
        %v515 = vpop.f32.mrf.mxu0
        %v516 = vadd.f32 %v484, %v515
        %517 = vmatmul.f32.gmra.mxu0 %v463
        %v518 = vpop.f32.mrf.mxu0
        %v519 = vadd.f32 %v484, %v518
        %520 = vmatmul.f32.gmra.mxu0 %v464
        %v521 = vpop.f32.mrf.mxu0
        %v522 = vadd.f32 %v484, %v521
        %523 = vmatmul.f32.gmra.mxu0 %v465
        %v524 = vpop.f32.mrf.mxu0
        %v525 = vadd.f32 %v484, %v524
        %526 = vdwg.mxu0
        %v527 = vld [vmem:[%s7] sm:$0x1]
        %v528 = vtanh.pop %v504
        %v529 = vtanh.pop %v507
        %v530 = vtanh.pop %v510
        %v531 = vtanh.pop %v513
        %v532 = vtanh.pop %v516
        %v533 = vtanh.pop %v519
        %v534 = vtanh.pop %v522
        %v535 = vtanh.pop %v525
        %v536 = vsub.f32 %v528, %v504
        %v537 = vsub.f32 %v529, %v507
        %v538 = vsub.f32 %v530, %v510
        %v539 = vsub.f32 %v531, %v513
        %v540 = vsub.f32 %v532, %v516
        %v541 = vsub.f32 %v533, %v519
        %v542 = vsub.f32 %v534, %v522
        %v543 = vsub.f32 %v535, %v525
        %v545 = vperm.slane %v527, 0
        %v547 = vmul.f32 %v545, %v536
        %v548 = vmul.f32 %v545, %v537
        %v549 = vmul.f32 %v545, %v538
        %v550 = vmul.f32 %v545, %v539
        %v551 = vmul.f32 %v545, %v540
        %v552 = vmul.f32 %v545, %v541
        %v553 = vmul.f32 %v545, %v542
        %v554 = vmul.f32 %v545, %v543
        %v555 = vadd.f32 %v504, %v547
        %v556 = vadd.f32 %v507, %v548
        %v557 = vadd.f32 %v510, %v549
        %v558 = vadd.f32 %v513, %v550
        %v559 = vadd.f32 %v516, %v551
        %v560 = vadd.f32 %v519, %v552
        %v561 = vadd.f32 %v522, %v553
        %v562 = vadd.f32 %v525, %v554
        %563 = vst [vmem:[%s299] sm:$0xff] %v555
        %564 = vst [vmem:[%s299 + $0x8] sm:$0xff] %v556
        %565 = vst [vmem:[%s299 + $0x10] sm:$0xff] %v557
        %566 = vst [vmem:[%s299 + $0x18] sm:$0xff] %v558
        %567 = vst [vmem:[%s299 + $0x20] sm:$0xff] %v559
        %568 = vst [vmem:[%s299 + $0x28] sm:$0xff] %v560
        %569 = vst [vmem:[%s299 + $0x30] sm:$0xff] %v561
        %570 = vst [vmem:[%s299 + $0x38] sm:$0xff] %v562
        %s571 = sand.u32 %s203, 1
        %s572 = scalar_lea.sflag [#allocation3], %s571
        %s573 = sand.u32 %s203, 1
        %s574 = smul.addr %s573, 64
        %s575 = scalar_lea.vmem [#allocation2], %s574
        // Predicated region
        $region53: #{tpu_custom_call.1} parent=51 // pred_check
          %p576 = pneg %p213
        $region54: #{tpu_custom_call.1} parent=51 // pred_check_branch
          %578 = sbr.rel (%p576) target = $region56
        $region55: #{tpu_custom_call.1} parent=51 // pred_region
          %s579 = smul.u32 8, %s22
          %581 = vsyncadd %s572, 0
          %s582 = smul.addr %s579, 8
          %s583 = scalar_lea.hbm %s8, %s582
          %s584 = sshll.u32 %s575, 4
          %s585 = int_to_ptr.vmem [resolvable:$true] %s584
          %s586 = sshll.u32 %s583, 4
          %s587 = int_to_ptr.hbm [resolvable:$true] %s586
          %592 = dma.vmem_to_hbm [thread:$0]  %s585, 1024, %s587, %s572, 128, 128, 8
        $region56: #{tpu_custom_call.1} parent=51 // pred_fallthru
          _
      $region52: #{tpu_custom_call.1} parent=5 // pred_fallthru
        _
      %p593 = scmp.le.s32.totalorder 2, %s17
      // Predicated region
      $region57: #{tpu_custom_call.1} parent=5 // pred_check
        %p594 = pneg %p593
      $region58: #{tpu_custom_call.1} parent=5 // pred_check_branch
        %596 = sbr.rel (%p594) target = $region60
      $region59: #{tpu_custom_call.1} parent=5 // pred_region
        %s597 = ssub.s32 %s17, 2
        // Predicated region
        $region61: #{tpu_custom_call.1} parent=59 // pred_check
          %p598 = pneg %p219
        $region62: #{tpu_custom_call.1} parent=59 // pred_check_branch
          %600 = sbr.rel (%p598) target = $region64
        $region63: #{tpu_custom_call.1} parent=59 // pred_region
          %s601 = sand.u32 %s204, 1
          %s602 = scalar_lea.sflag [#allocation3], %s601
          %s603 = sand.u32 %s204, 1
          %s604 = smul.addr %s603, 64
          %s605 = scalar_lea.vmem [#allocation2], %s604
          %607 = dma.done %s602, 1024
        $region64: #{tpu_custom_call.1} parent=59 // pred_fallthru
          _
      $region60: #{tpu_custom_call.1} parent=5 // pred_fallthru
        _
    $region6: #{tpu_custom_call.1} parent=1 // loop_footer
      %s21 = sadd.s32 1, %s17
    $region7: #{tpu_custom_call.1} parent=1 // loop_footer_branch
      %16 = sbr.rel target = $region3
    $region8: #{tpu_custom_call.1} parent=1 // loop_exit
      _
    %608 = vsyncpa [#allocation3], 1
    %s609 = scalar_lea.sflag [#allocation3], 1
    %610 = vsyncpa %s609, 1

</llo_original>
